<compile_context>
chip_gen: v6e
topology: v6e:2x2x1
jax: 0.10.0
libtpu: 0.0.40
codegen_flags: <defaults>
</compile_context>

<pallas_src>
import functools

import numpy as np
import jax
import jax.numpy as jnp
from jax.experimental import pallas as pl
from jax.experimental.pallas import tpu as pltpu


# ---------------------------------------------------------------------------
# Kernel
# ---------------------------------------------------------------------------
def poker2_kernel(cards_ref, params_ref, out_ref, *, hid_dim, out_dim,
                  lane_pad_out):
    H = hid_dim
    Hr = ((H + 7) // 8) * 8          # sublane-aligned row stride in the slab

    suits = cards_ref[0]             # (TB, NP) float32
    nums = cards_ref[1]              # (TB, NP) float32
    TB, NP = suits.shape

    # --- unpack the merged parameter slab (static slices, no data movement).
    w2 = params_ref[0 * Hr:0 * Hr + H, 0:H]          # enc layer 2
    w3 = params_ref[1 * Hr:1 * Hr + H, 0:H]          # enc layer 3
    w4 = params_ref[2 * Hr:2 * Hr + H, 0:H]          # dec layer 1
    w5 = params_ref[3 * Hr:3 * Hr + H, 0:H]          # dec layer 2
    w6 = params_ref[4 * Hr:4 * Hr + H, :]            # dec layer 3, lane-padded
    sm = params_ref[5 * Hr:5 * Hr + 8, 0:H]          # W1 rows + biases + corr
    b6 = params_ref[5 * Hr + 8:5 * Hr + 9, :]        # (1, LANES)

    w1_s = sm[0:1, :]
    w1_n = sm[1:2, :]
    b1 = sm[2:3, :]
    b2 = sm[3:4, :]
    b3 = sm[4:5, :]
    b4 = sm[5:6, :]
    b5 = sm[6:7, :]
    pad_corr = sm[7:8, :]            # (NP - n_cards) * enc(zero card slot)

    # --- enc layer 1, Linear(2, H): expanded elementwise so the K=2
    # contraction never touches the MXU.  (The NP-lanes -> NP-sublanes
    # broadcast here touches only TB*NP elements per card array, far below
    # the (TB*NP, H) matmul traffic of layers 2-3.)
    h = suits[..., None] * w1_s + nums[..., None] * w1_n + b1   # (TB, NP, H)
    h = jnp.maximum(h, 0.0)

    # --- enc layers 2-3, per-card Linear(H, H).  NP is a multiple of 8 so
    # these reshapes do not cross (8,128) tile boundaries (no VMEM relayout).
    h = h.reshape(TB * NP, H)
    h = jnp.maximum(
        jnp.dot(h, w2, preferred_element_type=jnp.float32) + b2, 0.0)
    h = jnp.dot(h, w3, preferred_element_type=jnp.float32) + b3
    enc = h.reshape(TB, NP, H)

    # --- pooling: einsum('bid,bjd->bijd').sum((1,2)) == (sum_i x_i)**2.
    # The padded card slots contribute a constant encoder row each; that
    # constant is pre-baked into pad_corr, so no per-element mask is needed.
    s = jnp.sum(enc, axis=1) - pad_corr              # (TB, H)
    p = s * s                                        # (TB, H)

    # --- dec hidden layers + final Linear(H, out_dim) (weights lane-padded).
    d = jnp.maximum(
        jnp.dot(p, w4, preferred_element_type=jnp.float32) + b4, 0.0)
    d = jnp.maximum(
        jnp.dot(d, w5, preferred_element_type=jnp.float32) + b5, 0.0)
    res = jnp.dot(d, w6, preferred_element_type=jnp.float32) + b6  # (TB, LANES)

    if lane_pad_out:
        out_ref[...] = res                 # tiny-B: lane-dense 128-wide store
    else:
        out_ref[...] = res[:, :out_dim]    # large-B: no write amplification


# ---------------------------------------------------------------------------
# Parameter construction / packing
# ---------------------------------------------------------------------------
def make_params(key, hid_dim, out_dim):
    """PyTorch-Linear-style init; weights stored as (in, out), biases (1, out)."""
    dims = [(2, hid_dim), (hid_dim, hid_dim), (hid_dim, hid_dim),
            (hid_dim, hid_dim), (hid_dim, hid_dim), (hid_dim, out_dim)]
    ws, bs = [], []
    for fin, fout in dims:
        key, kw, kb = jax.random.split(key, 3)
        bound = 1.0 / np.sqrt(fin)
        ws.append(jax.random.uniform(kw, (fin, fout), jnp.float32, -bound, bound))
        bs.append(jax.random.uniform(kb, (1, fout), jnp.float32, -bound, bound))
    return ws, bs


def pack_params(ws, bs, n_cards, n_card_slots):
    """Merge all 12 parameter tensors into ONE (5*Hr + 16, 128) f32 slab."""
    H = ws[1].shape[0]
    out_dim = ws[5].shape[1]
    Hr = ((H + 7) // 8) * 8
    lanes = max(128, ((H + 127) // 128) * 128, ((out_dim + 127) // 128) * 128)
    rows = 5 * Hr + 16

    P = jnp.zeros((rows, lanes), jnp.float32)
    for k, w in enumerate([ws[1], ws[2], ws[3], ws[4]]):      # 4x (H, H)
        P = P.at[k * Hr:k * Hr + H, 0:H].set(w)
    P = P.at[4 * Hr:4 * Hr + H, 0:out_dim].set(ws[5])         # W6 lane-padded

    base = 5 * Hr
    P = P.at[base + 0, 0:H].set(ws[0][0])                     # W1 row (suits)
    P = P.at[base + 1, 0:H].set(ws[0][1])                     # W1 row (nums)
    for r in range(5):
        P = P.at[base + 2 + r, 0:H].set(bs[r][0])             # b1 .. b5

    # Padded-card correction row: the encoder output of an all-zero card slot,
    # scaled by the number of padded slots.  HIGHEST precision keeps it in
    # ulp-level agreement with the in-kernel f32 MXU path.
    hp = jax.lax.Precision.HIGHEST
    e = jnp.maximum(bs[0], 0.0)                               # relu(b1), (1,H)
    e = jnp.maximum(jnp.dot(e, ws[1], precision=hp) + bs[1], 0.0)
    e = jnp.dot(e, ws[2], precision=hp) + bs[2]
    P = P.at[base + 7, 0:H].set(float(n_card_slots - n_cards) * e[0])

    P = P.at[base + 8, 0:out_dim].set(bs[5][0])               # b6 lane-padded
    return P


# ---------------------------------------------------------------------------
# Tiling / wrapper
# ---------------------------------------------------------------------------
def _choose_tb(batch):
    """Batch tile (batch already padded to a multiple of 8).

    Tiny-B: single full-extent tile (per-call fixed overhead dominates).
    Larger B: 256..2048-row tiles with >=4 grid steps when the batch allows
    it, so v7x gets >=2 pipelined steps per TensorCore while each step stays
    big enough to amortize the ~0.35us per-step overhead.
    """
    if batch <= 256:
        return batch
    tb = max(256, min(2048, batch // 4))
    tb -= tb % 8
    while batch % tb != 0:
        tb -= 8
    return tb


def _vmem_limit_bytes():
    """Scoped-VMEM limit: above the 16/32 MiB defaults (needed for 2048-row
    tiles, esp. on v5e), but safely below the chip's physical VMEM."""
    try:
        cap = pltpu.get_tpu_info().vmem_capacity_bytes
    except Exception:
        cap = 64 * 1024 * 1024
    return int(min(96 * 1024 * 1024, max(32 * 1024 * 1024, cap - 16 * 1024 * 1024)))


def poker2net_forward(suits, nums, ws, bs):
    B, N = suits.shape
    H = ws[1].shape[0]
    out_dim = ws[5].shape[1]

    # Pad cards to a sublane multiple and the batch to a multiple of 8 so all
    # blocks/reshapes are (8,128)-friendly; padded rows are sliced off below.
    NP = ((N + 7) // 8) * 8
    BP = ((B + 7) // 8) * 8
    suits_p = jnp.pad(suits.astype(jnp.float32), ((0, BP - B), (0, NP - N)))
    nums_p = jnp.pad(nums.astype(jnp.float32), ((0, BP - B), (0, NP - N)))
    cards = jnp.stack([suits_p, nums_p], axis=0)              # (2, BP, NP) f32

    # NOTE: params can be pre-packed once and reused across calls.
    params = pack_params(ws, bs, n_cards=N, n_card_slots=NP)
    R, LW = params.shape

    TB = _choose_tb(BP)
    grid = (BP // TB,)
    lane_pad_out = grid[0] == 1        # tiny-B regime: lane-dense 128-wide out
    out_w = LW if lane_pad_out else out_dim

    kernel = functools.partial(poker2_kernel, hid_dim=H, out_dim=out_dim,
                               lane_pad_out=lane_pad_out)

    # The parameter block has a constant index map so it is fetched once
    # across the whole grid.
    out = pl.pallas_call(
        kernel,
        out_shape=jax.ShapeDtypeStruct((BP, out_w), jnp.float32),
        grid=grid,
        in_specs=[
            pl.BlockSpec((2, TB, NP), lambda i: (0, i, 0)),
            pl.BlockSpec((R, LW), lambda i: (0, 0)),
        ],
        out_specs=pl.BlockSpec((TB, out_w), lambda i: (i, 0)),
        compiler_params=pltpu.CompilerParams(
            dimension_semantics=("parallel",),
            vmem_limit_bytes=_vmem_limit_bytes()),
    )(cards, params)

    return out[:B, :out_dim]


# ---------------------------------------------------------------------------
# Pure-JAX reference (replicates the PyTorch forward literally)
# ---------------------------------------------------------------------------
def poker2net_reference(suits, nums, ws, bs):
    x = jnp.stack([suits, nums], axis=-1).astype(jnp.float32)      # (B, N, 2)
    x = jnp.maximum(x @ ws[0] + bs[0][0], 0.0)
    x = jnp.maximum(x @ ws[1] + bs[1][0], 0.0)
    x = x @ ws[2] + bs[2][0]                                       # (B, N, H)
    x = jnp.einsum('bid,bjd->bijd', x, x)
    x = x.sum(axis=(1, 2))                                         # (B, H)
    x = jnp.maximum(x @ ws[3] + bs[3][0], 0.0)
    x = jnp.maximum(x @ ws[4] + bs[4][0], 0.0)
    x = x @ ws[5] + bs[5][0]
    return x


if __name__ == "__main__":
    B, N = 8, 5            # 8 hands of 5 cards
    HID, OUT = 32, 8

    key = jax.random.PRNGKey(0)
    k_suits, k_nums, k_params, k_s2, k_n2 = jax.random.split(key, 5)
    suits = jax.random.randint(k_suits, (B, N), 0, 4).astype(jnp.int32)
    nums = jax.random.randint(k_nums, (B, N), 0, 13).astype(jnp.int32)
    ws, bs = make_params(k_params, HID, OUT)

    # Tiny-B path (single grid step, lane-dense 128-wide output slab).
    out = jax.block_until_ready(poker2net_forward(suits, nums, ws, bs))
    ref = poker2net_reference(suits, nums, ws, bs)
    np.testing.assert_allclose(np.asarray(out), np.asarray(ref),
                               rtol=1e-4, atol=1e-3)

    # Larger-batch path (tiled grid, narrow (TB, out_dim) output stores).
    B2 = 1024
    suits2 = jax.random.randint(k_s2, (B2, N), 0, 4).astype(jnp.int32)
    nums2 = jax.random.randint(k_n2, (B2, N), 0, 13).astype(jnp.int32)
    out2 = jax.block_until_ready(poker2net_forward(suits2, nums2, ws, bs))
    ref2 = poker2net_reference(suits2, nums2, ws, bs)
    np.testing.assert_allclose(np.asarray(out2), np.asarray(ref2),
                               rtol=5e-4, atol=5e-3)

    print("KERNEL_OK")
</pallas_src>

<mosaic_0001>
module attributes {stable_mosaic.version = 11 : i64} {
  func.func @poker2_kernel(%arg0: i32, %arg1: memref<2x8x8xf32, #tpu.memory_space<vmem>>, %arg2: memref<176x128xf32, #tpu.memory_space<vmem>>, %arg3: memref<8x128xf32, #tpu.memory_space<vmem>>) attributes {dimension_semantics = [#tpu.dimension_semantics<parallel>], iteration_bounds = array<i64: 1>, scalar_prefetch = 0 : i64, scratch_operands = 0 : i64, tpu.core_type = #tpu.core_type<tc>, window_params = [{transform_indices = @transform_0, window_bounds = array<i64: 2, 8, 8>}, {pipeline_mode = #tpu.pipeline_mode<synchronous>, transform_indices = @transform_1, window_bounds = array<i64: 176, 128>}, {transform_indices = @transform_2, window_bounds = array<i64: 8, 128>}]} {
    %c0 = arith.constant 0 : index
    %c0_0 = arith.constant 0 : index
    %c0_1 = arith.constant 0 : index
    %0 = vector.load %arg1[%c0, %c0_0, %c0_1] : memref<2x8x8xf32, #tpu.memory_space<vmem>>, vector<1x8x8xf32>
    %1 = vector.shape_cast %0 : vector<1x8x8xf32> to vector<8x8xf32>
    %c1 = arith.constant 1 : index
    %c0_2 = arith.constant 0 : index
    %c0_3 = arith.constant 0 : index
    %2 = vector.load %arg1[%c1, %c0_2, %c0_3] : memref<2x8x8xf32, #tpu.memory_space<vmem>>, vector<1x8x8xf32>
    %3 = vector.shape_cast %2 : vector<1x8x8xf32> to vector<8x8xf32>
    %c0_4 = arith.constant 0 : index
    %c0_5 = arith.constant 0 : index
    %4 = vector.load %arg2[%c0_4, %c0_5] : memref<176x128xf32, #tpu.memory_space<vmem>>, vector<32x32xf32>
    %c32 = arith.constant 32 : index
    %c0_6 = arith.constant 0 : index
    %5 = vector.load %arg2[%c32, %c0_6] : memref<176x128xf32, #tpu.memory_space<vmem>>, vector<32x32xf32>
    %c64 = arith.constant 64 : index
    %c0_7 = arith.constant 0 : index
    %6 = vector.load %arg2[%c64, %c0_7] : memref<176x128xf32, #tpu.memory_space<vmem>>, vector<32x32xf32>
    %c96 = arith.constant 96 : index
    %c0_8 = arith.constant 0 : index
    %7 = vector.load %arg2[%c96, %c0_8] : memref<176x128xf32, #tpu.memory_space<vmem>>, vector<32x32xf32>
    %c128 = arith.constant 128 : index
    %c0_9 = arith.constant 0 : index
    %8 = vector.load %arg2[%c128, %c0_9] : memref<176x128xf32, #tpu.memory_space<vmem>>, vector<32x128xf32>
    %c160 = arith.constant 160 : index
    %c0_10 = arith.constant 0 : index
    %9 = vector.load %arg2[%c160, %c0_10] : memref<176x128xf32, #tpu.memory_space<vmem>>, vector<8x32xf32>
    %c168 = arith.constant 168 : index
    %c0_11 = arith.constant 0 : index
    %10 = vector.load %arg2[%c168, %c0_11] : memref<176x128xf32, #tpu.memory_space<vmem>>, vector<1x128xf32>
    %11 = vector.extract_strided_slice %9 {offsets = [0, 0], sizes = [1, 32], strides = [1, 1]} : vector<8x32xf32> to vector<1x32xf32>
    %12 = vector.extract_strided_slice %9 {offsets = [1, 0], sizes = [1, 32], strides = [1, 1]} : vector<8x32xf32> to vector<1x32xf32>
    %13 = vector.extract_strided_slice %9 {offsets = [2, 0], sizes = [1, 32], strides = [1, 1]} : vector<8x32xf32> to vector<1x32xf32>
    %14 = vector.extract_strided_slice %9 {offsets = [3, 0], sizes = [1, 32], strides = [1, 1]} : vector<8x32xf32> to vector<1x32xf32>
    %15 = vector.extract_strided_slice %9 {offsets = [4, 0], sizes = [1, 32], strides = [1, 1]} : vector<8x32xf32> to vector<1x32xf32>
    %16 = vector.extract_strided_slice %9 {offsets = [5, 0], sizes = [1, 32], strides = [1, 1]} : vector<8x32xf32> to vector<1x32xf32>
    %17 = vector.extract_strided_slice %9 {offsets = [6, 0], sizes = [1, 32], strides = [1, 1]} : vector<8x32xf32> to vector<1x32xf32>
    %18 = vector.extract_strided_slice %9 {offsets = [7, 0], sizes = [1, 32], strides = [1, 1]} : vector<8x32xf32> to vector<1x32xf32>
    %19 = vector.shape_cast %1 : vector<8x8xf32> to vector<8x8x1xf32>
    %20 = vector.shape_cast %11 : vector<1x32xf32> to vector<1x1x32xf32>
    %21 = vector.broadcast %19 : vector<8x8x1xf32> to vector<8x8x32xf32>
    %22 = vector.broadcast %20 : vector<1x1x32xf32> to vector<8x8x32xf32>
    %23 = arith.mulf %21, %22 : vector<8x8x32xf32>
    %24 = vector.shape_cast %3 : vector<8x8xf32> to vector<8x8x1xf32>
    %25 = vector.shape_cast %12 : vector<1x32xf32> to vector<1x1x32xf32>
    %26 = vector.broadcast %24 : vector<8x8x1xf32> to vector<8x8x32xf32>
    %27 = vector.broadcast %25 : vector<1x1x32xf32> to vector<8x8x32xf32>
    %28 = arith.mulf %26, %27 : vector<8x8x32xf32>
    %29 = arith.addf %23, %28 : vector<8x8x32xf32>
    %30 = vector.shape_cast %13 : vector<1x32xf32> to vector<1x1x32xf32>
    %31 = vector.broadcast %30 : vector<1x1x32xf32> to vector<8x8x32xf32>
    %32 = arith.addf %29, %31 : vector<8x8x32xf32>
    %cst = arith.constant 0.000000e+00 : f32
    %33 = vector.broadcast %cst : f32 to vector<8x8x32xf32>
    %34 = arith.maximumf %32, %33 : vector<8x8x32xf32>
    %35 = vector.shape_cast %34 : vector<8x8x32xf32> to vector<64x32xf32>
    %cst_12 = arith.constant dense<0.000000e+00> : vector<64x32xf32>
    %36 = tpu.matmul %35, %4, %cst_12 {dimension_numbers = #tpu.dot_dimension_numbers<[1], [0], [0], [1], [0, 0, 1, 1], [], []>} : vector<64x32xf32>, vector<32x32xf32>, vector<64x32xf32> -> vector<64x32xf32>
    %37 = vector.broadcast %14 : vector<1x32xf32> to vector<64x32xf32>
    %38 = arith.addf %36, %37 : vector<64x32xf32>
    %cst_13 = arith.constant 0.000000e+00 : f32
    %39 = vector.broadcast %cst_13 : f32 to vector<64x32xf32>
    %40 = arith.maximumf %38, %39 : vector<64x32xf32>
    %cst_14 = arith.constant dense<0.000000e+00> : vector<64x32xf32>
    %41 = tpu.matmul %40, %5, %cst_14 {dimension_numbers = #tpu.dot_dimension_numbers<[1], [0], [0], [1], [0, 0, 1, 1], [], []>} : vector<64x32xf32>, vector<32x32xf32>, vector<64x32xf32> -> vector<64x32xf32>
    %42 = vector.broadcast %15 : vector<1x32xf32> to vector<64x32xf32>
    %43 = arith.addf %41, %42 : vector<64x32xf32>
    %44 = vector.shape_cast %43 : vector<64x32xf32> to vector<8x8x32xf32>
    %cst_15 = arith.constant dense<0.000000e+00> : vector<8x32xf32>
    %45 = vector.multi_reduction <add>, %44, %cst_15 [1] : vector<8x8x32xf32> to vector<8x32xf32>
    %46 = vector.broadcast %18 : vector<1x32xf32> to vector<8x32xf32>
    %47 = arith.subf %45, %46 : vector<8x32xf32>
    %48 = arith.mulf %47, %47 : vector<8x32xf32>
    %cst_16 = arith.constant dense<0.000000e+00> : vector<8x32xf32>
    %49 = tpu.matmul %48, %6, %cst_16 {dimension_numbers = #tpu.dot_dimension_numbers<[1], [0], [0], [1], [0, 0, 1, 1], [], []>} : vector<8x32xf32>, vector<32x32xf32>, vector<8x32xf32> -> vector<8x32xf32>
    %50 = vector.broadcast %16 : vector<1x32xf32> to vector<8x32xf32>
    %51 = arith.addf %49, %50 : vector<8x32xf32>
    %cst_17 = arith.constant 0.000000e+00 : f32
    %52 = vector.broadcast %cst_17 : f32 to vector<8x32xf32>
    %53 = arith.maximumf %51, %52 : vector<8x32xf32>
    %cst_18 = arith.constant dense<0.000000e+00> : vector<8x32xf32>
    %54 = tpu.matmul %53, %7, %cst_18 {dimension_numbers = #tpu.dot_dimension_numbers<[1], [0], [0], [1], [0, 0, 1, 1], [], []>} : vector<8x32xf32>, vector<32x32xf32>, vector<8x32xf32> -> vector<8x32xf32>
    %55 = vector.broadcast %17 : vector<1x32xf32> to vector<8x32xf32>
    %56 = arith.addf %54, %55 : vector<8x32xf32>
    %cst_19 = arith.constant 0.000000e+00 : f32
    %57 = vector.broadcast %cst_19 : f32 to vector<8x32xf32>
    %58 = arith.maximumf %56, %57 : vector<8x32xf32>
    %cst_20 = arith.constant dense<0.000000e+00> : vector<8x128xf32>
    %59 = tpu.matmul %58, %8, %cst_20 {dimension_numbers = #tpu.dot_dimension_numbers<[1], [0], [0], [1], [0, 0, 1, 1], [], []>} : vector<8x32xf32>, vector<32x128xf32>, vector<8x128xf32> -> vector<8x128xf32>
    %60 = vector.broadcast %10 : vector<1x128xf32> to vector<8x128xf32>
    %61 = arith.addf %59, %60 : vector<8x128xf32>
    %c0_21 = arith.constant 0 : index
    %c0_22 = arith.constant 0 : index
    %62 = vector.load %arg3[%c0_21, %c0_22] : memref<8x128xf32, #tpu.memory_space<vmem>>, vector<8x128xf32>
    tpu.vector_store %arg3[%c0_21, %c0_22], %61 {strides = array<i32>} : memref<8x128xf32, #tpu.memory_space<vmem>>, vector<8x128xf32>,
    return
  }
  func.func @transform_0(%arg0: i32) -> (i32, i32, i32) {
    %c0_i32 = arith.constant 0 : i32
    %c0_i32_0 = arith.constant 0 : i32
    %c0_i32_1 = arith.constant 0 : i32
    return %c0_i32, %arg0, %c0_i32_0 : i32, i32, i32
  }
  func.func @transform_1(%arg0: i32) -> (i32, i32) {
    %c0_i32 = arith.constant 0 : i32
    %c0_i32_0 = arith.constant 0 : i32
    %c0_i32_1 = arith.constant 0 : i32
    return %c0_i32, %c0_i32_0 : i32, i32
  }
  func.func @transform_2(%arg0: i32) -> (i32, i32) {
    %c0_i32 = arith.constant 0 : i32
    %c0_i32_0 = arith.constant 0 : i32
    return %arg0, %c0_i32 : i32, i32
  }
}

</mosaic_0001>

<llo_original>
// kernel: tpu_custom_call.1
$region0: #{tpu_custom_call.1}
  #allocation0 [shape = 'u32[]', space=smem, size = 0x4, offset = 0x4, fixed_abs, tag = 'smem constant byte address 0x4 - core index']
  #allocation1 [shape = 'u32[144,128]{1,0:T(1,128)}', space=vmem, size = 0x12000, scoped, tag = 'internal scratch']
  %s0 = inlined_call_operand.hbm [shape: f32[2,8,8], index: 0, kind: input, shape index: {}]
  %s1 = inlined_call_operand.hbm [shape: f32[176,128], index: 1, kind: input, shape index: {}]
  %s2 = inlined_call_operand.hbm [shape: f32[8,128], index: 2, kind: output, shape index: {}]
  %s3 = sld [smem:[#allocation0]]
  $region26: #{tpu_custom_call.1} parent=0
    _
  %s5 = ssub.s32 1, %s3
  %s6 = scalar_select 0, %s5, %s3
  $region1: #{tpu_custom_call.1} parent=0
    #allocation2 [shape = 'u8[8192]{0}', space=vmem, size = 0x2000, scoped, tag = 'input window, operand 0, single buffered']
    #allocation3 [shape = 's32[1]{0}', space=sflag, size = 0x4, scoped, tag = 'scoped memory for tpu_custom_call.1']
    #allocation4 [shape = 's32[1]{0}', space=sflag, size = 0x4, scoped, tag = 'scoped memory for tpu_custom_call.1']
    #allocation5 [shape = 'u8[90112]{0}', space=vmem, size = 0x16000, scoped, tag = 'input window, operand 1, single buffered']
    #allocation6 [shape = 's32[1]{0}', space=sflag, size = 0x4, scoped, tag = 'scoped memory for tpu_custom_call.1']
    #allocation7 [shape = 'u8[4096]{0}', space=vmem, size = 0x1000, scoped, tag = 'output window, operand 0, single buffered']
    %7 = vsyncpa [#allocation3], 0
    %8 = vsyncpa [#allocation6], 0
    %9 = vsyncpa [#allocation4], 0
    // Predicated region
    $region2: #{tpu_custom_call.1} parent=1 // pred_check
      _
    $region3: #{tpu_custom_call.1} parent=1 // pred_check_branch
      %11 = sbr.rel (0) target = $region5
    $region4: #{tpu_custom_call.1} parent=1 // pred_region
      %s13 = ssub.s32 256, 256
      %14 = vsyncadd [#allocation3], %s13
      %s15 = sshll.u32 [#allocation2], 4
      %s16 = int_to_ptr.vmem [resolvable:$true] %s15
      %21 = dma.hbm_to_vmem [thread:$0]  %s0, 256, %s16, [#allocation3], 128, 128, 8
    $region5: #{tpu_custom_call.1} parent=1 // pred_fallthru
      _
    // Predicated region
    $region6: #{tpu_custom_call.1} parent=1 // pred_check
      _
    $region7: #{tpu_custom_call.1} parent=1 // pred_check_branch
      %23 = sbr.rel (0) target = $region9
    $region8: #{tpu_custom_call.1} parent=1 // pred_region
      %s25 = ssub.s32 2816, 2816
      %26 = vsyncadd [#allocation6], %s25
      %s27 = sshll.u32 [#allocation5], 4
      %s28 = int_to_ptr.vmem [resolvable:$true] %s27
      %33 = dma.hbm_to_vmem [thread:$0]  %s1, 2816, %s28, [#allocation6], 128, 128, 8
    $region9: #{tpu_custom_call.1} parent=1 // pred_fallthru
      _
    // Predicated region
    $region10: #{tpu_custom_call.1} parent=1 // pred_check
      _
    $region11: #{tpu_custom_call.1} parent=1 // pred_check_branch
      %35 = sbr.rel (0) target = $region13
    $region12: #{tpu_custom_call.1} parent=1 // pred_region
      %36 = dma.done [#allocation3], 256
    $region13: #{tpu_custom_call.1} parent=1 // pred_fallthru
      _
    // Predicated region
    $region14: #{tpu_custom_call.1} parent=1 // pred_check
      _
    $region15: #{tpu_custom_call.1} parent=1 // pred_check_branch
      %38 = sbr.rel (0) target = $region17
    $region16: #{tpu_custom_call.1} parent=1 // pred_region
      %39 = dma.done [#allocation6], 2816
    $region17: #{tpu_custom_call.1} parent=1 // pred_fallthru
      _
    %v40 = vld [vmem:[#allocation2] sm:$0xff]
    %s41 = scalar_lea.vmem [#allocation2], 8
    %v42 = vld [vmem:[%s41] sm:$0xff]
    %v43 = vld [vmem:[#allocation5] sm:$0xff]
    %v44 = vld [vmem:[#allocation5 + $0x8] sm:$0xff]
    %v45 = vld [vmem:[#allocation5 + $0x10] sm:$0xff]
    %v46 = vld [vmem:[#allocation5 + $0x18] sm:$0xff]
    %v47 = vld [vmem:[#allocation5 + $0x20] sm:$0xff]
    %v48 = vld [vmem:[#allocation5 + $0x28] sm:$0xff]
    %v49 = vld [vmem:[#allocation5 + $0x30] sm:$0xff]
    %v50 = vld [vmem:[#allocation5 + $0x38] sm:$0xff]
    %v51 = vld [vmem:[#allocation5 + $0x40] sm:$0xff]
    %v52 = vld [vmem:[#allocation5 + $0x48] sm:$0xff]
    %v53 = vld [vmem:[#allocation5 + $0x50] sm:$0xff]
    %v54 = vld [vmem:[#allocation5 + $0x58] sm:$0xff]
    %v55 = vld [vmem:[#allocation5 + $0x60] sm:$0xff]
    %v56 = vld [vmem:[#allocation5 + $0x68] sm:$0xff]
    %v57 = vld [vmem:[#allocation5 + $0x70] sm:$0xff]
    %v58 = vld [vmem:[#allocation5 + $0x78] sm:$0xff]
    %v59 = vld [vmem:[#allocation5 + $0x80] sm:$0xff]
    %v60 = vld [vmem:[#allocation5 + $0x88] sm:$0xff]
    %v61 = vld [vmem:[#allocation5 + $0x90] sm:$0xff]
    %v62 = vld [vmem:[#allocation5 + $0x98] sm:$0xff]
    %v63 = vld [vmem:[#allocation5 + $0xa0] sm:$0xff]
    %v64 = vld [vmem:[#allocation5 + $0xa8] sm:$0x1]
    %v65 = vlaneseq
    %v66 = vshrl.u32 %v65, 7
    %v67 = vsub.s32 0, %v66
    %v68 = vrot.slane %v40, %v67
    %70 = vbcast.lane.b32.xlu0 %v68, 256
    %v71 = vpop.permute.xlu0 %70
    %v72 = vlaneseq
    %v73 = vshrl.u32 %v72, 7
    %v74 = vsub.s32 1, %v73
    %v75 = vrot.slane %v40, %v74
    %77 = vbcast.lane.b32.xlu0 %v75, 256
    %v78 = vpop.permute.xlu0 %77
    %v79 = vlaneseq
    %v80 = vshrl.u32 %v79, 7
    %v81 = vsub.s32 2, %v80
    %v82 = vrot.slane %v40, %v81
    %84 = vbcast.lane.b32.xlu0 %v82, 256
    %v85 = vpop.permute.xlu0 %84
    %v86 = vlaneseq
    %v87 = vshrl.u32 %v86, 7
    %v88 = vsub.s32 3, %v87
    %v89 = vrot.slane %v40, %v88
    %91 = vbcast.lane.b32.xlu0 %v89, 256
    %v92 = vpop.permute.xlu0 %91
    %v93 = vlaneseq
    %v94 = vshrl.u32 %v93, 7
    %v95 = vsub.s32 4, %v94
    %v96 = vrot.slane %v40, %v95
    %98 = vbcast.lane.b32.xlu0 %v96, 256
    %v99 = vpop.permute.xlu0 %98
    %v100 = vlaneseq
    %v101 = vshrl.u32 %v100, 7
    %v102 = vsub.s32 5, %v101
    %v103 = vrot.slane %v40, %v102
    %105 = vbcast.lane.b32.xlu0 %v103, 256
    %v106 = vpop.permute.xlu0 %105
    %v107 = vlaneseq
    %v108 = vshrl.u32 %v107, 7
    %v109 = vsub.s32 6, %v108
    %v110 = vrot.slane %v40, %v109
    %112 = vbcast.lane.b32.xlu0 %v110, 256
    %v113 = vpop.permute.xlu0 %112
    %v114 = vlaneseq
    %v115 = vshrl.u32 %v114, 7
    %v116 = vsub.s32 7, %v115
    %v117 = vrot.slane %v40, %v116
    %119 = vbcast.lane.b32.xlu0 %v117, 256
    %v120 = vpop.permute.xlu0 %119
    %v121 = vlaneseq
    %v122 = vshrl.u32 %v121, 7
    %v123 = vsub.s32 0, %v122
    %v124 = vrot.slane %v63, %v123
    %v125 = vmul.f32 %v71, %v124
    %v126 = vmul.f32 %v78, %v124
    %v127 = vmul.f32 %v85, %v124
    %v128 = vmul.f32 %v92, %v124
    %v129 = vmul.f32 %v99, %v124
    %v130 = vmul.f32 %v106, %v124
    %v131 = vmul.f32 %v113, %v124
    %v132 = vmul.f32 %v120, %v124
    %v133 = vlaneseq
    %v134 = vshrl.u32 %v133, 7
    %v135 = vsub.s32 0, %v134
    %v136 = vrot.slane %v42, %v135
    %138 = vbcast.lane.b32.xlu0 %v136, 256
    %v139 = vpop.permute.xlu0 %138
    %v140 = vlaneseq
    %v141 = vshrl.u32 %v140, 7
    %v142 = vsub.s32 1, %v141
    %v143 = vrot.slane %v42, %v142
    %145 = vbcast.lane.b32.xlu0 %v143, 256
    %v146 = vpop.permute.xlu0 %145
    %v147 = vlaneseq
    %v148 = vshrl.u32 %v147, 7
    %v149 = vsub.s32 2, %v148
    %v150 = vrot.slane %v42, %v149
    %152 = vbcast.lane.b32.xlu0 %v150, 256
    %v153 = vpop.permute.xlu0 %152
    %v154 = vlaneseq
    %v155 = vshrl.u32 %v154, 7
    %v156 = vsub.s32 3, %v155
    %v157 = vrot.slane %v42, %v156
    %159 = vbcast.lane.b32.xlu0 %v157, 256
    %v160 = vpop.permute.xlu0 %159
    %v161 = vlaneseq
    %v162 = vshrl.u32 %v161, 7
    %v163 = vsub.s32 4, %v162
    %v164 = vrot.slane %v42, %v163
    %166 = vbcast.lane.b32.xlu0 %v164, 256
    %v167 = vpop.permute.xlu0 %166
    %v168 = vlaneseq
    %v169 = vshrl.u32 %v168, 7
    %v170 = vsub.s32 5, %v169
    %v171 = vrot.slane %v42, %v170
    %173 = vbcast.lane.b32.xlu0 %v171, 256
    %v174 = vpop.permute.xlu0 %173
    %v175 = vlaneseq
    %v176 = vshrl.u32 %v175, 7
    %v177 = vsub.s32 6, %v176
    %v178 = vrot.slane %v42, %v177
    %180 = vbcast.lane.b32.xlu0 %v178, 256
    %v181 = vpop.permute.xlu0 %180
    %v182 = vlaneseq
    %v183 = vshrl.u32 %v182, 7
    %v184 = vsub.s32 7, %v183
    %v185 = vrot.slane %v42, %v184
    %187 = vbcast.lane.b32.xlu0 %v185, 256
    %v188 = vpop.permute.xlu0 %187
    %v189 = vlaneseq
    %v190 = vshrl.u32 %v189, 7
    %v191 = vsub.s32 1, %v190
    %v192 = vrot.slane %v63, %v191
    %v193 = vmul.f32 %v139, %v192
    %v194 = vmul.f32 %v146, %v192
    %v195 = vmul.f32 %v153, %v192
    %v196 = vmul.f32 %v160, %v192
    %v197 = vmul.f32 %v167, %v192
    %v198 = vmul.f32 %v174, %v192
    %v199 = vmul.f32 %v181, %v192
    %v200 = vmul.f32 %v188, %v192
    %v201 = vadd.f32 %v125, %v193
    %v202 = vadd.f32 %v126, %v194
    %v203 = vadd.f32 %v127, %v195
    %v204 = vadd.f32 %v128, %v196
    %v205 = vadd.f32 %v129, %v197
    %v206 = vadd.f32 %v130, %v198
    %v207 = vadd.f32 %v131, %v199
    %v208 = vadd.f32 %v132, %v200
    %v209 = vlaneseq
    %v210 = vshrl.u32 %v209, 7
    %v211 = vsub.s32 2, %v210
    %v212 = vrot.slane %v63, %v211
    %v213 = vadd.f32 %v201, %v212
    %v214 = vadd.f32 %v202, %v212
    %v215 = vadd.f32 %v203, %v212
    %v216 = vadd.f32 %v204, %v212
    %v217 = vadd.f32 %v205, %v212
    %v218 = vadd.f32 %v206, %v212
    %v219 = vadd.f32 %v207, %v212
    %v220 = vadd.f32 %v208, %v212
    %v221 = vmax.f32 %v213, 0.0
    %v222 = vmax.f32 %v214, 0.0
    %v223 = vmax.f32 %v215, 0.0
    %v224 = vmax.f32 %v216, 0.0
    %v225 = vmax.f32 %v217, 0.0
    %v226 = vmax.f32 %v218, 0.0
    %v227 = vmax.f32 %v219, 0.0
    %v228 = vmax.f32 %v220, 0.0
    %v229 = vlaneseq
    %v230 = vshrl.u32 %v229, 7
    %v231 = vsub.s32 3, %v230
    %v232 = vrot.slane %v63, %v231
    %vm233 = vcmask 261120
    %v235 = vsel %vm233, %v221, 0
    %v238 = vsel %vm233, %v222, 0
    %v241 = vsel %vm233, %v223, 0
    %v244 = vsel %vm233, %v224, 0
    %v247 = vsel %vm233, %v225, 0
    %v250 = vsel %vm233, %v226, 0
    %v253 = vsel %vm233, %v227, 0
    %v256 = vsel %vm233, %v228, 0
    %258 = vmatprep.subr.mxu0 0.0
    %259 = vmatpush1.msra.mxu0 0.0
    %260 = vmatprep.subr.mxu0 0.0
    %261 = vmatpush1.msra.mxu0 0.0
    %262 = vmatprep.subr.mxu0 0.0
    %263 = vmatpush1.msra.mxu0 0.0
    %264 = vmatprep.subr.mxu0 0.0
    %265 = vmatpush1.msra.mxu0 0.0
    %266 = vmatprep.subr.mxu0 0.0
    %267 = vmatpush1.msra.mxu0 0.0
    %268 = vmatprep.subr.mxu0 0.0
    %269 = vmatpush1.msra.mxu0 0.0
    %270 = vmatprep.subr.mxu0 0.0
    %271 = vmatpush1.msra.mxu0 0.0
    %272 = vmatprep.subr.mxu0 0.0
    %273 = vmatpush1.msra.mxu0 0.0
    %274 = vmatprep.subr.mxu0 0.0
    %275 = vmatpush1.msra.mxu0 0.0
    %276 = vmatprep.subr.mxu0 0.0
    %277 = vmatpush1.msra.mxu0 0.0
    %278 = vmatprep.subr.mxu0 0.0
    %279 = vmatpush1.msra.mxu0 0.0
    %280 = vmatprep.subr.mxu0 0.0
    %281 = vmatpush1.msra.mxu0 0.0
    %282 = vmatprep.subr.mxu0 0.0
    %283 = vmatpush1.msra.mxu0 %v46
    %284 = vmatprep.subr.mxu0 0.0
    %285 = vmatpush1.msra.mxu0 %v45
    %286 = vmatprep.subr.mxu0 0.0
    %287 = vmatpush1.msra.mxu0 %v44
    %288 = vmatprep.subr.mxu0 0.0
    %289 = vmatpush1.msra.mxu0 %v43
    %290 = vmatprep.subr.mxu0 0.0
    %291 = vmatpush2.msra.mxu0 0.0
    %292 = vmatprep.subr.mxu0 0.0
    %293 = vmatpush2.msra.mxu0 0.0
    %294 = vmatprep.subr.mxu0 0.0
    %295 = vmatpush2.msra.mxu0 0.0
    %296 = vmatprep.subr.mxu0 0.0
    %297 = vmatpush2.msra.mxu0 0.0
    %298 = vmatprep.subr.mxu0 0.0
    %299 = vmatpush2.msra.mxu0 0.0
    %300 = vmatprep.subr.mxu0 0.0
    %301 = vmatpush2.msra.mxu0 0.0
    %302 = vmatprep.subr.mxu0 0.0
    %303 = vmatpush2.msra.mxu0 0.0
    %304 = vmatprep.subr.mxu0 0.0
    %305 = vmatpush2.msra.mxu0 0.0
    %306 = vmatprep.subr.mxu0 0.0
    %307 = vmatpush2.msra.mxu0 0.0
    %308 = vmatprep.subr.mxu0 0.0
    %309 = vmatpush2.msra.mxu0 0.0
    %310 = vmatprep.subr.mxu0 0.0
    %311 = vmatpush2.msra.mxu0 0.0
    %312 = vmatprep.subr.mxu0 0.0
    %313 = vmatpush2.msra.mxu0 0.0
    %314 = vmatprep.subr.mxu0 0.0
    %315 = vmatpush2.msra.mxu0 0.0
    %316 = vmatprep.subr.mxu0 0.0
    %317 = vmatpush2.msra.mxu0 0.0
    %318 = vmatprep.subr.mxu0 0.0
    %319 = vmatpush2.msra.mxu0 0.0
    %320 = vmatprep.subr.mxu0 0.0
    %321 = vmatpush2.msra.mxu0 0.0
    %322 = vmatprep.mubr.f32.mxu0 0.0
    %323 = vmatmul.mubr.f32.gmra.mxu0 %v235
    %v324 = vpop.f32.mrf.mxu0
    %v325 = vadd.f32 %v232, %v324
    %v326 = vpop.f32.mrf.mxu0
    %327 = vmatprep.mubr.f32.mxu0 0.0
    %328 = vmatmul.mubr.f32.gmra.mxu0 %v238
    %v329 = vpop.f32.mrf.mxu0
    %v330 = vadd.f32 %v232, %v329
    %v331 = vpop.f32.mrf.mxu0
    %332 = vmatprep.mubr.f32.mxu0 0.0
    %333 = vmatmul.mubr.f32.gmra.mxu0 %v241
    %v334 = vpop.f32.mrf.mxu0
    %v335 = vadd.f32 %v232, %v334
    %v336 = vpop.f32.mrf.mxu0
    %337 = vmatprep.mubr.f32.mxu0 0.0
    %338 = vmatmul.mubr.f32.gmra.mxu0 %v244
    %v339 = vpop.f32.mrf.mxu0
    %v340 = vadd.f32 %v232, %v339
    %v341 = vpop.f32.mrf.mxu0
    %342 = vmatprep.mubr.f32.mxu0 0.0
    %343 = vmatmul.mubr.f32.gmra.mxu0 %v247
    %v344 = vpop.f32.mrf.mxu0
    %v345 = vadd.f32 %v232, %v344
    %v346 = vpop.f32.mrf.mxu0
    %347 = vmatprep.mubr.f32.mxu0 0.0
    %348 = vmatmul.mubr.f32.gmra.mxu0 %v250
    %v349 = vpop.f32.mrf.mxu0
    %v350 = vadd.f32 %v232, %v349
    %v351 = vpop.f32.mrf.mxu0
    %352 = vmatprep.mubr.f32.mxu0 0.0
    %353 = vmatmul.mubr.f32.gmra.mxu0 %v253
    %v354 = vpop.f32.mrf.mxu0
    %v355 = vadd.f32 %v232, %v354
    %v356 = vpop.f32.mrf.mxu0
    %357 = vmatprep.mubr.f32.mxu0 0.0
    %358 = vmatmul.mubr.f32.gmra.mxu0 %v256
    %v359 = vpop.f32.mrf.mxu0
    %v360 = vadd.f32 %v232, %v359
    %v361 = vpop.f32.mrf.mxu0
    %362 = vdwg.mxu0
    %v363 = vmax.f32 %v325, 0.0
    %v364 = vmax.f32 %v330, 0.0
    %v365 = vmax.f32 %v335, 0.0
    %v366 = vmax.f32 %v340, 0.0
    %v367 = vmax.f32 %v345, 0.0
    %v368 = vmax.f32 %v350, 0.0
    %v369 = vmax.f32 %v355, 0.0
    %v370 = vmax.f32 %v360, 0.0
    %v371 = vlaneseq
    %v372 = vshrl.u32 %v371, 7
    %v373 = vsub.s32 4, %v372
    %v374 = vrot.slane %v63, %v373
    %v376 = vsel %vm233, %v363, 0
    %v379 = vsel %vm233, %v364, 0
    %v382 = vsel %vm233, %v365, 0
    %v385 = vsel %vm233, %v366, 0
    %v388 = vsel %vm233, %v367, 0
    %v391 = vsel %vm233, %v368, 0
    %v394 = vsel %vm233, %v369, 0
    %v397 = vsel %vm233, %v370, 0
    %399 = vmatprep.subr.mxu0 0.0
    %400 = vmatpush1.msra.mxu0 0.0
    %401 = vmatprep.subr.mxu0 0.0
    %402 = vmatpush1.msra.mxu0 0.0
    %403 = vmatprep.subr.mxu0 0.0
    %404 = vmatpush1.msra.mxu0 0.0
    %405 = vmatprep.subr.mxu0 0.0
    %406 = vmatpush1.msra.mxu0 0.0
    %407 = vmatprep.subr.mxu0 0.0
    %408 = vmatpush1.msra.mxu0 0.0
    %409 = vmatprep.subr.mxu0 0.0
    %410 = vmatpush1.msra.mxu0 0.0
    %411 = vmatprep.subr.mxu0 0.0
    %412 = vmatpush1.msra.mxu0 0.0
    %413 = vmatprep.subr.mxu0 0.0
    %414 = vmatpush1.msra.mxu0 0.0
    %415 = vmatprep.subr.mxu0 0.0
    %416 = vmatpush1.msra.mxu0 0.0
    %417 = vmatprep.subr.mxu0 0.0
    %418 = vmatpush1.msra.mxu0 0.0
    %419 = vmatprep.subr.mxu0 0.0
    %420 = vmatpush1.msra.mxu0 0.0
    %421 = vmatprep.subr.mxu0 0.0
    %422 = vmatpush1.msra.mxu0 0.0
    %423 = vmatprep.subr.mxu0 0.0
    %424 = vmatpush1.msra.mxu0 %v50
    %425 = vmatprep.subr.mxu0 0.0
    %426 = vmatpush1.msra.mxu0 %v49
    %427 = vmatprep.subr.mxu0 0.0
    %428 = vmatpush1.msra.mxu0 %v48
    %429 = vmatprep.subr.mxu0 0.0
    %430 = vmatpush1.msra.mxu0 %v47
    %431 = vmatprep.subr.mxu0 0.0
    %432 = vmatpush2.msra.mxu0 0.0
    %433 = vmatprep.subr.mxu0 0.0
    %434 = vmatpush2.msra.mxu0 0.0
    %435 = vmatprep.subr.mxu0 0.0
    %436 = vmatpush2.msra.mxu0 0.0
    %437 = vmatprep.subr.mxu0 0.0
    %438 = vmatpush2.msra.mxu0 0.0
    %439 = vmatprep.subr.mxu0 0.0
    %440 = vmatpush2.msra.mxu0 0.0
    %441 = vmatprep.subr.mxu0 0.0
    %442 = vmatpush2.msra.mxu0 0.0
    %443 = vmatprep.subr.mxu0 0.0
    %444 = vmatpush2.msra.mxu0 0.0
    %445 = vmatprep.subr.mxu0 0.0
    %446 = vmatpush2.msra.mxu0 0.0
    %447 = vmatprep.subr.mxu0 0.0
    %448 = vmatpush2.msra.mxu0 0.0
    %449 = vmatprep.subr.mxu0 0.0
    %450 = vmatpush2.msra.mxu0 0.0
    %451 = vmatprep.subr.mxu0 0.0
    %452 = vmatpush2.msra.mxu0 0.0
    %453 = vmatprep.subr.mxu0 0.0
    %454 = vmatpush2.msra.mxu0 0.0
    %455 = vmatprep.subr.mxu0 0.0
    %456 = vmatpush2.msra.mxu0 0.0
    %457 = vmatprep.subr.mxu0 0.0
    %458 = vmatpush2.msra.mxu0 0.0
    %459 = vmatprep.subr.mxu0 0.0
    %460 = vmatpush2.msra.mxu0 0.0
    %461 = vmatprep.subr.mxu0 0.0
    %462 = vmatpush2.msra.mxu0 0.0
    %463 = vmatprep.mubr.f32.mxu0 0.0
    %464 = vmatmul.mubr.f32.gmra.mxu0 %v376
    %v465 = vpop.f32.mrf.mxu0
    %v466 = vadd.f32 %v374, %v465
    %v467 = vpop.f32.mrf.mxu0
    %468 = vmatprep.mubr.f32.mxu0 0.0
    %469 = vmatmul.mubr.f32.gmra.mxu0 %v379
    %v470 = vpop.f32.mrf.mxu0
    %v471 = vadd.f32 %v374, %v470
    %v472 = vpop.f32.mrf.mxu0
    %473 = vmatprep.mubr.f32.mxu0 0.0
    %474 = vmatmul.mubr.f32.gmra.mxu0 %v382
    %v475 = vpop.f32.mrf.mxu0
    %v476 = vadd.f32 %v374, %v475
    %v477 = vpop.f32.mrf.mxu0
    %478 = vmatprep.mubr.f32.mxu0 0.0
    %479 = vmatmul.mubr.f32.gmra.mxu0 %v385
    %v480 = vpop.f32.mrf.mxu0
    %v481 = vadd.f32 %v374, %v480
    %v482 = vpop.f32.mrf.mxu0
    %483 = vmatprep.mubr.f32.mxu0 0.0
    %484 = vmatmul.mubr.f32.gmra.mxu0 %v388
    %v485 = vpop.f32.mrf.mxu0
    %v486 = vadd.f32 %v374, %v485
    %v487 = vpop.f32.mrf.mxu0
    %488 = vmatprep.mubr.f32.mxu0 0.0
    %489 = vmatmul.mubr.f32.gmra.mxu0 %v391
    %v490 = vpop.f32.mrf.mxu0
    %v491 = vadd.f32 %v374, %v490
    %v492 = vpop.f32.mrf.mxu0
    %493 = vmatprep.mubr.f32.mxu0 0.0
    %494 = vmatmul.mubr.f32.gmra.mxu0 %v394
    %v495 = vpop.f32.mrf.mxu0
    %v496 = vadd.f32 %v374, %v495
    %v497 = vpop.f32.mrf.mxu0
    %498 = vmatprep.mubr.f32.mxu0 0.0
    %499 = vmatmul.mubr.f32.gmra.mxu0 %v397
    %v500 = vpop.f32.mrf.mxu0
    %v501 = vadd.f32 %v374, %v500
    %v502 = vpop.f32.mrf.mxu0
    %503 = vdwg.mxu0
    %v504 = vsel %vm233, %v466, 0.0
    %v505 = vrot.slane %v504, 4
    %v506 = vadd.f32 %v504, %v505
    %v507 = vrot.slane %v506, 2
    %v508 = vadd.f32 %v506, %v507
    %v509 = vrot.slane %v508, 1
    %v510 = vadd.f32 %v508, %v509
    %v511 = vsel %vm233, %v471, 0.0
    %v512 = vrot.slane %v511, 4
    %v513 = vadd.f32 %v511, %v512
    %v514 = vrot.slane %v513, 2
    %v515 = vadd.f32 %v513, %v514
    %v516 = vrot.slane %v515, 1
    %v517 = vadd.f32 %v515, %v516
    %v518 = vsel %vm233, %v476, 0.0
    %v519 = vrot.slane %v518, 4
    %v520 = vadd.f32 %v518, %v519
    %v521 = vrot.slane %v520, 2
    %v522 = vadd.f32 %v520, %v521
    %v523 = vrot.slane %v522, 1
    %v524 = vadd.f32 %v522, %v523
    %v525 = vsel %vm233, %v481, 0.0
    %v526 = vrot.slane %v525, 4
    %v527 = vadd.f32 %v525, %v526
    %v528 = vrot.slane %v527, 2
    %v529 = vadd.f32 %v527, %v528
    %v530 = vrot.slane %v529, 1
    %v531 = vadd.f32 %v529, %v530
    %v532 = vsel %vm233, %v486, 0.0
    %v533 = vrot.slane %v532, 4
    %v534 = vadd.f32 %v532, %v533
    %v535 = vrot.slane %v534, 2
    %v536 = vadd.f32 %v534, %v535
    %v537 = vrot.slane %v536, 1
    %v538 = vadd.f32 %v536, %v537
    %v539 = vsel %vm233, %v491, 0.0
    %v540 = vrot.slane %v539, 4
    %v541 = vadd.f32 %v539, %v540
    %v542 = vrot.slane %v541, 2
    %v543 = vadd.f32 %v541, %v542
    %v544 = vrot.slane %v543, 1
    %v545 = vadd.f32 %v543, %v544
    %v546 = vsel %vm233, %v496, 0.0
    %v547 = vrot.slane %v546, 4
    %v548 = vadd.f32 %v546, %v547
    %v549 = vrot.slane %v548, 2
    %v550 = vadd.f32 %v548, %v549
    %v551 = vrot.slane %v550, 1
    %v552 = vadd.f32 %v550, %v551
    %v553 = vsel %vm233, %v501, 0.0
    %v554 = vrot.slane %v553, 4
    %v555 = vadd.f32 %v553, %v554
    %v556 = vrot.slane %v555, 2
    %v557 = vadd.f32 %v555, %v556
    %v558 = vrot.slane %v557, 1
    %v559 = vadd.f32 %v557, %v558
    %v560 = vlaneseq
    %v561 = vshrl.u32 %v560, 7
    %v562 = vsub.s32 7, %v561
    %v563 = vrot.slane %v63, %v562
    %v564 = vsub.f32 %v510, %v563
    %v565 = vsub.f32 %v517, %v563
    %v566 = vsub.f32 %v524, %v563
    %v567 = vsub.f32 %v531, %v563
    %v568 = vsub.f32 %v538, %v563
    %v569 = vsub.f32 %v545, %v563
    %v570 = vsub.f32 %v552, %v563
    %v571 = vsub.f32 %v559, %v563
    %v572 = vmul.f32 %v564, %v564
    %v573 = vmul.f32 %v565, %v565
    %v574 = vmul.f32 %v566, %v566
    %v575 = vmul.f32 %v567, %v567
    %v576 = vmul.f32 %v568, %v568
    %v577 = vmul.f32 %v569, %v569
    %v578 = vmul.f32 %v570, %v570
    %v579 = vmul.f32 %v571, %v571
    %v580 = vlaneseq
    %v581 = vshrl.u32 %v580, 7
    %v582 = vsub.s32 5, %v581
    %v583 = vrot.slane %v63, %v582
    %v592 = vrot.slane %v573, 7
    %vm593 = vcmask 1041409
    %v594 = vsel %vm593, %v592, %v572
    %v595 = vrot.slane %v574, 6
    %vm596 = vcmask 1042434
    %v597 = vsel %vm596, %v595, %v594
    %v598 = vrot.slane %v575, 5
    %vm599 = vcmask 1043459
    %v600 = vsel %vm599, %v598, %v597
    %v601 = vrot.slane %v576, 4
    %vm602 = vcmask 1044484
    %v603 = vsel %vm602, %v601, %v600
    %v604 = vrot.slane %v577, 3
    %vm605 = vcmask 1045509
    %v606 = vsel %vm605, %v604, %v603
    %v607 = vrot.slane %v578, 2
    %vm608 = vcmask 1046534
    %v609 = vsel %vm608, %v607, %v606
    %v610 = vrot.slane %v579, 1
    %vm611 = vcmask 1047559
    %v612 = vsel %vm611, %v610, %v609
    %v613 = vsel %vm233, %v612, 0
    %615 = vmatprep.subr.mxu0 0.0
    %616 = vmatpush1.msra.mxu0 0.0
    %617 = vmatprep.subr.mxu0 0.0
    %618 = vmatpush1.msra.mxu0 0.0
    %619 = vmatprep.subr.mxu0 0.0
    %620 = vmatpush1.msra.mxu0 0.0
    %621 = vmatprep.subr.mxu0 0.0
    %622 = vmatpush1.msra.mxu0 0.0
    %623 = vmatprep.subr.mxu0 0.0
    %624 = vmatpush1.msra.mxu0 0.0
    %625 = vmatprep.subr.mxu0 0.0
    %626 = vmatpush1.msra.mxu0 0.0
    %627 = vmatprep.subr.mxu0 0.0
    %628 = vmatpush1.msra.mxu0 0.0
    %629 = vmatprep.subr.mxu0 0.0
    %630 = vmatpush1.msra.mxu0 0.0
    %631 = vmatprep.subr.mxu0 0.0
    %632 = vmatpush1.msra.mxu0 0.0
    %633 = vmatprep.subr.mxu0 0.0
    %634 = vmatpush1.msra.mxu0 0.0
    %635 = vmatprep.subr.mxu0 0.0
    %636 = vmatpush1.msra.mxu0 0.0
    %637 = vmatprep.subr.mxu0 0.0
    %638 = vmatpush1.msra.mxu0 0.0
    %639 = vmatprep.subr.mxu0 0.0
    %640 = vmatpush1.msra.mxu0 %v54
    %641 = vmatprep.subr.mxu0 0.0
    %642 = vmatpush1.msra.mxu0 %v53
    %643 = vmatprep.subr.mxu0 0.0
    %644 = vmatpush1.msra.mxu0 %v52
    %645 = vmatprep.subr.mxu0 0.0
    %646 = vmatpush1.msra.mxu0 %v51
    %647 = vmatprep.subr.mxu0 0.0
    %648 = vmatpush2.msra.mxu0 0.0
    %649 = vmatprep.subr.mxu0 0.0
    %650 = vmatpush2.msra.mxu0 0.0
    %651 = vmatprep.subr.mxu0 0.0
    %652 = vmatpush2.msra.mxu0 0.0
    %653 = vmatprep.subr.mxu0 0.0
    %654 = vmatpush2.msra.mxu0 0.0
    %655 = vmatprep.subr.mxu0 0.0
    %656 = vmatpush2.msra.mxu0 0.0
    %657 = vmatprep.subr.mxu0 0.0
    %658 = vmatpush2.msra.mxu0 0.0
    %659 = vmatprep.subr.mxu0 0.0
    %660 = vmatpush2.msra.mxu0 0.0
    %661 = vmatprep.subr.mxu0 0.0
    %662 = vmatpush2.msra.mxu0 0.0
    %663 = vmatprep.subr.mxu0 0.0
    %664 = vmatpush2.msra.mxu0 0.0
    %665 = vmatprep.subr.mxu0 0.0
    %666 = vmatpush2.msra.mxu0 0.0
    %667 = vmatprep.subr.mxu0 0.0
    %668 = vmatpush2.msra.mxu0 0.0
    %669 = vmatprep.subr.mxu0 0.0
    %670 = vmatpush2.msra.mxu0 0.0
    %671 = vmatprep.subr.mxu0 0.0
    %672 = vmatpush2.msra.mxu0 0.0
    %673 = vmatprep.subr.mxu0 0.0
    %674 = vmatpush2.msra.mxu0 0.0
    %675 = vmatprep.subr.mxu0 0.0
    %676 = vmatpush2.msra.mxu0 0.0
    %677 = vmatprep.subr.mxu0 0.0
    %678 = vmatpush2.msra.mxu0 0.0
    %679 = vmatprep.mubr.f32.mxu0 0.0
    %680 = vmatmul.mubr.f32.gmra.mxu0 %v613
    %v681 = vpop.f32.mrf.mxu0
    %v682 = vadd.f32 %v583, %v681
    %v683 = vpop.f32.mrf.mxu0
    %684 = vdwg.mxu0
    %v685 = vmax.f32 %v682, 0.0
    %v686 = vlaneseq
    %v687 = vshrl.u32 %v686, 7
    %v688 = vsub.s32 6, %v687
    %v689 = vrot.slane %v63, %v688
    %v691 = vsel %vm233, %v685, 0
    %693 = vmatprep.subr.mxu0 0.0
    %694 = vmatpush1.msra.mxu0 0.0
    %695 = vmatprep.subr.mxu0 0.0
    %696 = vmatpush1.msra.mxu0 0.0
    %697 = vmatprep.subr.mxu0 0.0
    %698 = vmatpush1.msra.mxu0 0.0
    %699 = vmatprep.subr.mxu0 0.0
    %700 = vmatpush1.msra.mxu0 0.0
    %701 = vmatprep.subr.mxu0 0.0
    %702 = vmatpush1.msra.mxu0 0.0
    %703 = vmatprep.subr.mxu0 0.0
    %704 = vmatpush1.msra.mxu0 0.0
    %705 = vmatprep.subr.mxu0 0.0
    %706 = vmatpush1.msra.mxu0 0.0
    %707 = vmatprep.subr.mxu0 0.0
    %708 = vmatpush1.msra.mxu0 0.0
    %709 = vmatprep.subr.mxu0 0.0
    %710 = vmatpush1.msra.mxu0 0.0
    %711 = vmatprep.subr.mxu0 0.0
    %712 = vmatpush1.msra.mxu0 0.0
    %713 = vmatprep.subr.mxu0 0.0
    %714 = vmatpush1.msra.mxu0 0.0
    %715 = vmatprep.subr.mxu0 0.0
    %716 = vmatpush1.msra.mxu0 0.0
    %717 = vmatprep.subr.mxu0 0.0
    %718 = vmatpush1.msra.mxu0 %v58
    %719 = vmatprep.subr.mxu0 0.0
    %720 = vmatpush1.msra.mxu0 %v57
    %721 = vmatprep.subr.mxu0 0.0
    %722 = vmatpush1.msra.mxu0 %v56
    %723 = vmatprep.subr.mxu0 0.0
    %724 = vmatpush1.msra.mxu0 %v55
    %725 = vmatprep.subr.mxu0 0.0
    %726 = vmatpush2.msra.mxu0 0.0
    %727 = vmatprep.subr.mxu0 0.0
    %728 = vmatpush2.msra.mxu0 0.0
    %729 = vmatprep.subr.mxu0 0.0
    %730 = vmatpush2.msra.mxu0 0.0
    %731 = vmatprep.subr.mxu0 0.0
    %732 = vmatpush2.msra.mxu0 0.0
    %733 = vmatprep.subr.mxu0 0.0
    %734 = vmatpush2.msra.mxu0 0.0
    %735 = vmatprep.subr.mxu0 0.0
    %736 = vmatpush2.msra.mxu0 0.0
    %737 = vmatprep.subr.mxu0 0.0
    %738 = vmatpush2.msra.mxu0 0.0
    %739 = vmatprep.subr.mxu0 0.0
    %740 = vmatpush2.msra.mxu0 0.0
    %741 = vmatprep.subr.mxu0 0.0
    %742 = vmatpush2.msra.mxu0 0.0
    %743 = vmatprep.subr.mxu0 0.0
    %744 = vmatpush2.msra.mxu0 0.0
    %745 = vmatprep.subr.mxu0 0.0
    %746 = vmatpush2.msra.mxu0 0.0
    %747 = vmatprep.subr.mxu0 0.0
    %748 = vmatpush2.msra.mxu0 0.0
    %749 = vmatprep.subr.mxu0 0.0
    %750 = vmatpush2.msra.mxu0 0.0
    %751 = vmatprep.subr.mxu0 0.0
    %752 = vmatpush2.msra.mxu0 0.0
    %753 = vmatprep.subr.mxu0 0.0
    %754 = vmatpush2.msra.mxu0 0.0
    %755 = vmatprep.subr.mxu0 0.0
    %756 = vmatpush2.msra.mxu0 0.0
    %757 = vmatprep.mubr.f32.mxu0 0.0
    %758 = vmatmul.mubr.f32.gmra.mxu0 %v691
    %v759 = vpop.f32.mrf.mxu0
    %v760 = vadd.f32 %v689, %v759
    %v761 = vpop.f32.mrf.mxu0
    %762 = vdwg.mxu0
    %v763 = vmax.f32 %v760, 0.0
    %v764 = vlaneseq
    %v765 = vshrl.u32 %v764, 7
    %v766 = vsub.s32 0, %v765
    %v767 = vrot.slane %v64, %v766
    %v769 = vsel %vm233, %v763, 0
    %771 = vmatprep.subr.mxu0 0.0
    %772 = vmatpush1.msra.mxu0 0.0
    %773 = vmatprep.subr.mxu0 0.0
    %774 = vmatpush1.msra.mxu0 0.0
    %775 = vmatprep.subr.mxu0 0.0
    %776 = vmatpush1.msra.mxu0 0.0
    %777 = vmatprep.subr.mxu0 0.0
    %778 = vmatpush1.msra.mxu0 0.0
    %779 = vmatprep.subr.mxu0 0.0
    %780 = vmatpush1.msra.mxu0 0.0
    %781 = vmatprep.subr.mxu0 0.0
    %782 = vmatpush1.msra.mxu0 0.0
    %783 = vmatprep.subr.mxu0 0.0
    %784 = vmatpush1.msra.mxu0 0.0
    %785 = vmatprep.subr.mxu0 0.0
    %786 = vmatpush1.msra.mxu0 0.0
    %787 = vmatprep.subr.mxu0 0.0
    %788 = vmatpush1.msra.mxu0 0.0
    %789 = vmatprep.subr.mxu0 0.0
    %790 = vmatpush1.msra.mxu0 0.0
    %791 = vmatprep.subr.mxu0 0.0
    %792 = vmatpush1.msra.mxu0 0.0
    %793 = vmatprep.subr.mxu0 0.0
    %794 = vmatpush1.msra.mxu0 0.0
    %795 = vmatprep.subr.mxu0 0.0
    %796 = vmatpush1.msra.mxu0 %v62
    %797 = vmatprep.subr.mxu0 0.0
    %798 = vmatpush1.msra.mxu0 %v61
    %799 = vmatprep.subr.mxu0 0.0
    %800 = vmatpush1.msra.mxu0 %v60
    %801 = vmatprep.subr.mxu0 0.0
    %802 = vmatpush1.msra.mxu0 %v59
    %803 = vmatprep.subr.mxu0 0.0
    %804 = vmatpush2.msra.mxu0 0.0
    %805 = vmatprep.subr.mxu0 0.0
    %806 = vmatpush2.msra.mxu0 0.0
    %807 = vmatprep.subr.mxu0 0.0
    %808 = vmatpush2.msra.mxu0 0.0
    %809 = vmatprep.subr.mxu0 0.0
    %810 = vmatpush2.msra.mxu0 0.0
    %811 = vmatprep.subr.mxu0 0.0
    %812 = vmatpush2.msra.mxu0 0.0
    %813 = vmatprep.subr.mxu0 0.0
    %814 = vmatpush2.msra.mxu0 0.0
    %815 = vmatprep.subr.mxu0 0.0
    %816 = vmatpush2.msra.mxu0 0.0
    %817 = vmatprep.subr.mxu0 0.0
    %818 = vmatpush2.msra.mxu0 0.0
    %819 = vmatprep.subr.mxu0 0.0
    %820 = vmatpush2.msra.mxu0 0.0
    %821 = vmatprep.subr.mxu0 0.0
    %822 = vmatpush2.msra.mxu0 0.0
    %823 = vmatprep.subr.mxu0 0.0
    %824 = vmatpush2.msra.mxu0 0.0
    %825 = vmatprep.subr.mxu0 0.0
    %826 = vmatpush2.msra.mxu0 0.0
    %827 = vmatprep.subr.mxu0 0.0
    %828 = vmatpush2.msra.mxu0 0.0
    %829 = vmatprep.subr.mxu0 0.0
    %830 = vmatpush2.msra.mxu0 0.0
    %831 = vmatprep.subr.mxu0 0.0
    %832 = vmatpush2.msra.mxu0 0.0
    %833 = vmatprep.subr.mxu0 0.0
    %834 = vmatpush2.msra.mxu0 0.0
    %835 = vmatprep.mubr.f32.mxu0 0.0
    %836 = vmatmul.mubr.f32.gmra.mxu0 %v769
    %v837 = vpop.f32.mrf.mxu0
    %v838 = vadd.f32 %v767, %v837
    %v839 = vpop.f32.mrf.mxu0
    %840 = vdwg.mxu0
    %841 = vst [vmem:[#allocation7] sm:$0xff] %v838
    // Predicated region
    $region18: #{tpu_custom_call.1} parent=1 // pred_check
      _
    $region19: #{tpu_custom_call.1} parent=1 // pred_check_branch
      %843 = sbr.rel (0) target = $region21
    $region20: #{tpu_custom_call.1} parent=1 // pred_region
      %s845 = ssub.s32 128, 128
      %846 = vsyncadd [#allocation4], %s845
      %s848 = sshll.u32 [#allocation7], 4
      %s849 = int_to_ptr.vmem [resolvable:$true] %s848
      %851 = dma.vmem_to_hbm [thread:$0]  %s849, 128, %s2, [#allocation4]
    $region21: #{tpu_custom_call.1} parent=1 // pred_fallthru
      _
    // Predicated region
    $region22: #{tpu_custom_call.1} parent=1 // pred_check
      _
    $region23: #{tpu_custom_call.1} parent=1 // pred_check_branch
      %853 = sbr.rel (0) target = $region25
    $region24: #{tpu_custom_call.1} parent=1 // pred_region
      %854 = dma.done [#allocation4], 128
    $region25: #{tpu_custom_call.1} parent=1 // pred_fallthru
      _
    %855 = vsyncpa [#allocation3], 1
    %856 = vsyncpa [#allocation6], 1
    %857 = vsyncpa [#allocation4], 1

</llo_original>
